<compile_context>
chip_gen: v7x
topology: tpu7x:2x2x1
jax: 0.10.0
libtpu: 0.0.40
codegen_flags: <defaults>
</compile_context>

<pallas_src>
import math

import jax
import jax.numpy as jnp
from jax import lax
from jax.experimental import pallas as pl
from jax.experimental.pallas import tpu as pltpu


def _pick_tile_h(hout, wout, max_tile_pixels=4096):
    """Choose the output-row tile size.

    Constraints: tile_h divides hout, and tile_h*wout is either the full spatial
    extent (single tile) or a multiple of 128 so output stores stay lane-dense
    and block shapes satisfy the (8, 128) tiling rule.  The pixel budget keeps
    double-buffered tiles comfortably inside scoped VMEM on all generations.
    """
    if hout * wout <= max_tile_pixels:
        return hout
    candidates = [d for d in range(1, hout + 1)
                  if hout % d == 0
                  and d * wout <= max_tile_pixels
                  and (d * wout) % 128 == 0]
    return candidates[-1] if candidates else hout


def _make_kernel(stride, tile_h, wout, c_in, c_out):
    s = stride
    tile_pix = tile_h * wout

    def kernel(xph_ref, dw_ref, w1_ref, b1_ref, w2_ref, o_ref):
        # xph_ref : (1, s*s, Hq, Wq, c_in)  stride-polyphase padded input (NHWC phases)
        # dw_ref  : (9, c_in)               depthwise weights, tap-major (kh*3+kw)
        # w1_ref  : (c_in, c_in)            smooth 1x1 weights with BN scale folded in
        # b1_ref  : (c_in, 1)               folded BN shift (bias)
        # w2_ref  : (c_out, c_in)           final 1x1 weights
        # o_ref   : (1, c_out, tile_pix)    NCHW output tile (pixels on lanes)
        t = pl.program_id(1)
        row0 = t * tile_h                         # first output row of this tile

        # --- depthwise 3x3 conv (VPU): 9 contiguous polyphase taps ---
        acc = None
        for kh in range(3):
            for kw in range(3):
                p = (kh % s) * s + (kw % s)       # phase holding this tap
                ah, aw = kh // s, kw // s         # offsets inside that phase
                tap = xph_ref[0, p, pl.ds(row0 + ah, tile_h), pl.ds(aw, wout), :]
                contrib = tap * dw_ref[kh * 3 + kw:kh * 3 + kw + 1, :]
                acc = contrib if acc is None else acc + contrib
        # Single remaining in-kernel reshape (layout no-op when wout % 8 == 0).
        y = acc.reshape(tile_pix, c_in)           # (pixels, c_in)

        # --- smooth layer: 1x1 conv (BN folded) + bias + ReLU, computed transposed
        #     so the result keeps pixels on the lane axis (lane-dense). ---
        # NOTE: with tiny c_in the contraction is lane-starved; for production FPN
        # channel counts (>=128) these dots map to full MXU tiles.
        z = lax.dot_general(w1_ref[...], y, (((1,), (1,)), ((), ())),
                            preferred_element_type=jnp.float32)     # (c_in, pixels)
        z = jnp.maximum(z + b1_ref[...], 0.0)

        # --- final 1x1 conv: (c_out, c_in) @ (c_in, pixels) -> NCHW tile ---
        o_ref[0] = jnp.dot(w2_ref[...], z, preferred_element_type=jnp.float32)

    return kernel


def conv_block_pallas(x_nchw, params, stride):
    """Forward pass of Conv_block.  x_nchw: (N, C_in, H, W) float32; NCHW in/out."""
    dw, w1f, b1, w2c = params
    n, c_in, h, w = x_nchw.shape
    c_out = w2c.shape[0]
    s = stride
    hout = (h + 2 - 3) // s + 1
    wout = (w + 2 - 3) // s + 1
    hw = hout * wout

    # Wrapper layout work: pad + stride-polyphase split.  One O(input) pass, no
    # 9-tap duplication; every in-kernel tap becomes a contiguous slice.
    hp, wp = h + 2, w + 2
    hq, wq = (hp + s - 1) // s, (wp + s - 1) // s
    x_nhwc = jnp.transpose(x_nchw, (0, 2, 3, 1))
    xp = jnp.pad(x_nhwc, ((0, 0), (1, 1 + hq * s - hp), (1, 1 + wq * s - wp), (0, 0)))
    phases = (xp.reshape(n, hq, s, wq, s, c_in)
                .transpose(0, 2, 4, 1, 3, 5)
                .reshape(n, s * s, hq, wq, c_in))

    tile_h = _pick_tile_h(hout, wout)
    num_tiles = hout // tile_h
    tile_pix = tile_h * wout

    kernel = _make_kernel(s, tile_h, wout, c_in, c_out)
    out_flat = pl.pallas_call(
        kernel,
        out_shape=jax.ShapeDtypeStruct((n, c_out, hw), jnp.float32),
        grid=(n, num_tiles),
        in_specs=[
            # Full padded image per batch element; index_map is constant along the
            # tile axis so it is DMA'd once per image and reused by every tile.
            # TODO(synk): for very large images, halo-tile this block too (manual
            # DMA double-buffering) instead of holding the full padded image in VMEM.
            pl.BlockSpec((1, s * s, hq, wq, c_in), lambda i, t: (i, 0, 0, 0, 0)),
            pl.BlockSpec((9, c_in), lambda i, t: (0, 0)),
            pl.BlockSpec((c_in, c_in), lambda i, t: (0, 0)),
            pl.BlockSpec((c_in, 1), lambda i, t: (0, 0)),
            pl.BlockSpec((c_out, c_in), lambda i, t: (0, 0)),
        ],
        out_specs=pl.BlockSpec((1, c_out, tile_pix), lambda i, t: (i, 0, t)),
        compiler_params=pltpu.CompilerParams(
            dimension_semantics=("parallel", "parallel")),
    )(phases, dw, w1f, b1, w2c)

    # Free reshape (no transpose): the kernel already emitted NCHW with flat pixels.
    return out_flat.reshape(n, c_out, hout, wout)


def init_params(key, c_in, c_out):
    """Deterministic synthetic parameters matching the PyTorch module's shapes."""
    k1, k2, k3 = jax.random.split(key, 3)

    # dwconv: PyTorch weight (c_in, 1, 3, 3) -> tap-major (9, c_in)
    dw_w_pt = jax.random.normal(k1, (c_in, 1, 3, 3), jnp.float32) * math.sqrt(2.0 / 9.0)
    dw = jnp.transpose(dw_w_pt[:, 0], (1, 2, 0)).reshape(9, c_in)

    # smooth 1x1 conv weight (c_in, c_in, 1, 1), normal(0, sqrt(2/out)) per Conv_BN_ReLU
    w1_pt = jax.random.normal(k2, (c_in, c_in, 1, 1), jnp.float32) * math.sqrt(2.0 / c_in)
    w1c = w1_pt[:, :, 0, 0]                              # (c_out_dim, c_in_dim)

    # BatchNorm2d: gamma=1, beta=0, running_mean=0, running_var=1, eps=1e-5
    # TODO(synk): BN evaluated in inference mode with freshly-initialized running
    #             stats; training-mode batch statistics are not computed in-kernel.
    eps = 1e-5
    gamma = jnp.ones((c_in,), jnp.float32)
    beta = jnp.zeros((c_in,), jnp.float32)
    mean = jnp.zeros((c_in,), jnp.float32)
    var = jnp.ones((c_in,), jnp.float32)
    scale = gamma / jnp.sqrt(var + eps)
    shift = beta - mean * scale
    w1f = w1c * scale[:, None]                           # fold BN scale into weights
    b1 = shift[:, None]                                  # (c_in, 1) bias

    # final 1x1 conv weight (c_out, c_in, 1, 1)
    w2_pt = jax.random.normal(k3, (c_out, c_in, 1, 1), jnp.float32) * math.sqrt(2.0 / c_in)
    w2c = w2_pt[:, :, 0, 0]                              # (c_out, c_in)

    params = (dw, w1f, b1, w2c)
    raw = (dw_w_pt, w1_pt, gamma, beta, mean, var, eps, w2_pt)
    return params, raw


def reference(x_nchw, raw, stride):
    """Pure-JAX (XLA conv) reference of the PyTorch forward pass, for validation."""
    dw_w_pt, w1_pt, gamma, beta, mean, var, eps, w2_pt = raw
    c_in = x_nchw.shape[1]
    dn = ("NCHW", "OIHW", "NCHW")
    y = lax.conv_general_dilated(x_nchw, dw_w_pt, (stride, stride), ((1, 1), (1, 1)),
                                 dimension_numbers=dn, feature_group_count=c_in)
    y = lax.conv_general_dilated(y, w1_pt, (1, 1), ((0, 0), (0, 0)), dimension_numbers=dn)
    y = (y - mean[None, :, None, None]) / jnp.sqrt(var + eps)[None, :, None, None]
    y = y * gamma[None, :, None, None] + beta[None, :, None, None]
    y = jnp.maximum(y, 0.0)
    y = lax.conv_general_dilated(y, w2_pt, (1, 1), ((0, 0), (0, 0)), dimension_numbers=dn)
    return y


if __name__ == "__main__":
    N, C_IN, H, W = 2, 4, 16, 16
    C_OUT, STRIDE = 8, 2

    key = jax.random.PRNGKey(0)
    kx, kp = jax.random.split(key)
    x = jax.random.normal(kx, (N, C_IN, H, W), jnp.float32)
    params, raw = init_params(kp, C_IN, C_OUT)

    out = conv_block_pallas(x, params, STRIDE)
    jax.block_until_ready(out)

    ref = reference(x, raw, STRIDE)
    assert out.shape == ref.shape, (out.shape, ref.shape)
    err = float(jnp.max(jnp.abs(out - ref)))
    assert jnp.allclose(out, ref, atol=1e-4, rtol=1e-4), err

    print("KERNEL_OK")
</pallas_src>

<mosaic_0001>
module attributes {stable_mosaic.version = 11 : i64} {
  func.func @kernel(%arg0: i32, %arg1: i32, %arg2: memref<1x4x9x9x4xf32, #tpu.memory_space<vmem>>, %arg3: memref<9x4xf32, #tpu.memory_space<vmem>>, %arg4: memref<4x4xf32, #tpu.memory_space<vmem>>, %arg5: memref<4x1xf32, #tpu.memory_space<vmem>>, %arg6: memref<8x4xf32, #tpu.memory_space<vmem>>, %arg7: memref<1x8x64xf32, #tpu.memory_space<vmem>>) attributes {dimension_semantics = [#tpu.dimension_semantics<parallel>, #tpu.dimension_semantics<parallel>], iteration_bounds = array<i64: 2, 1>, scalar_prefetch = 0 : i64, scratch_operands = 0 : i64, tpu.core_type = #tpu.core_type<tc>, window_params = [{transform_indices = @transform_0, window_bounds = array<i64: 1, 4, 9, 9, 4>}, {pipeline_mode = #tpu.pipeline_mode<synchronous>, transform_indices = @transform_1, window_bounds = array<i64: 9, 4>}, {pipeline_mode = #tpu.pipeline_mode<synchronous>, transform_indices = @transform_2, window_bounds = array<i64: 4, 4>}, {pipeline_mode = #tpu.pipeline_mode<synchronous>, transform_indices = @transform_3, window_bounds = array<i64: 4, 1>}, {pipeline_mode = #tpu.pipeline_mode<synchronous>, transform_indices = @transform_4, window_bounds = array<i64: 8, 4>}, {transform_indices = @transform_5, window_bounds = array<i64: 1, 8, 64>}]} {
    %c8_i32 = arith.constant 8 : i32
    %0 = arith.muli %arg1, %c8_i32 : i32
    %c0_i32 = arith.constant 0 : i32
    %1 = arith.addi %0, %c0_i32 : i32
    %c0 = arith.constant 0 : index
    %c0_0 = arith.constant 0 : index
    %2 = arith.index_cast %1 : i32 to index
    %c0_1 = arith.constant 0 : index
    %c0_2 = arith.constant 0 : index
    %3 = vector.load %arg2[%c0, %c0_0, %2, %c0_1, %c0_2] : memref<1x4x9x9x4xf32, #tpu.memory_space<vmem>>, vector<1x1x8x8x4xf32>
    %4 = vector.shape_cast %3 : vector<1x1x8x8x4xf32> to vector<8x8x4xf32>
    %c0_3 = arith.constant 0 : index
    %c0_4 = arith.constant 0 : index
    %5 = vector.load %arg3[%c0_3, %c0_4] : memref<9x4xf32, #tpu.memory_space<vmem>>, vector<1x4xf32>
    %6 = vector.shape_cast %5 : vector<1x4xf32> to vector<1x1x4xf32>
    %7 = vector.broadcast %6 : vector<1x1x4xf32> to vector<8x8x4xf32>
    %8 = arith.mulf %4, %7 : vector<8x8x4xf32>
    %c0_i32_5 = arith.constant 0 : i32
    %9 = arith.addi %0, %c0_i32_5 : i32
    %c0_6 = arith.constant 0 : index
    %c1 = arith.constant 1 : index
    %10 = arith.index_cast %9 : i32 to index
    %c0_7 = arith.constant 0 : index
    %c0_8 = arith.constant 0 : index
    %11 = vector.load %arg2[%c0_6, %c1, %10, %c0_7, %c0_8] : memref<1x4x9x9x4xf32, #tpu.memory_space<vmem>>, vector<1x1x8x8x4xf32>
    %12 = vector.shape_cast %11 : vector<1x1x8x8x4xf32> to vector<8x8x4xf32>
    %c1_9 = arith.constant 1 : index
    %c0_10 = arith.constant 0 : index
    %13 = vector.load %arg3[%c1_9, %c0_10] : memref<9x4xf32, #tpu.memory_space<vmem>>, vector<1x4xf32>
    %14 = vector.shape_cast %13 : vector<1x4xf32> to vector<1x1x4xf32>
    %15 = vector.broadcast %14 : vector<1x1x4xf32> to vector<8x8x4xf32>
    %16 = arith.mulf %12, %15 : vector<8x8x4xf32>
    %17 = arith.addf %8, %16 : vector<8x8x4xf32>
    %c0_i32_11 = arith.constant 0 : i32
    %18 = arith.addi %0, %c0_i32_11 : i32
    %c0_12 = arith.constant 0 : index
    %c0_13 = arith.constant 0 : index
    %19 = arith.index_cast %18 : i32 to index
    %c1_14 = arith.constant 1 : index
    %c0_15 = arith.constant 0 : index
    %20 = vector.load %arg2[%c0_12, %c0_13, %19, %c1_14, %c0_15] : memref<1x4x9x9x4xf32, #tpu.memory_space<vmem>>, vector<1x1x8x8x4xf32>
    %21 = vector.shape_cast %20 : vector<1x1x8x8x4xf32> to vector<8x8x4xf32>
    %c2 = arith.constant 2 : index
    %c0_16 = arith.constant 0 : index
    %22 = vector.load %arg3[%c2, %c0_16] : memref<9x4xf32, #tpu.memory_space<vmem>>, vector<1x4xf32>
    %23 = vector.shape_cast %22 : vector<1x4xf32> to vector<1x1x4xf32>
    %24 = vector.broadcast %23 : vector<1x1x4xf32> to vector<8x8x4xf32>
    %25 = arith.mulf %21, %24 : vector<8x8x4xf32>
    %26 = arith.addf %17, %25 : vector<8x8x4xf32>
    %c0_i32_17 = arith.constant 0 : i32
    %27 = arith.addi %0, %c0_i32_17 : i32
    %c0_18 = arith.constant 0 : index
    %c2_19 = arith.constant 2 : index
    %28 = arith.index_cast %27 : i32 to index
    %c0_20 = arith.constant 0 : index
    %c0_21 = arith.constant 0 : index
    %29 = vector.load %arg2[%c0_18, %c2_19, %28, %c0_20, %c0_21] : memref<1x4x9x9x4xf32, #tpu.memory_space<vmem>>, vector<1x1x8x8x4xf32>
    %30 = vector.shape_cast %29 : vector<1x1x8x8x4xf32> to vector<8x8x4xf32>
    %c3 = arith.constant 3 : index
    %c0_22 = arith.constant 0 : index
    %31 = vector.load %arg3[%c3, %c0_22] : memref<9x4xf32, #tpu.memory_space<vmem>>, vector<1x4xf32>
    %32 = vector.shape_cast %31 : vector<1x4xf32> to vector<1x1x4xf32>
    %33 = vector.broadcast %32 : vector<1x1x4xf32> to vector<8x8x4xf32>
    %34 = arith.mulf %30, %33 : vector<8x8x4xf32>
    %35 = arith.addf %26, %34 : vector<8x8x4xf32>
    %c0_i32_23 = arith.constant 0 : i32
    %36 = arith.addi %0, %c0_i32_23 : i32
    %c0_24 = arith.constant 0 : index
    %c3_25 = arith.constant 3 : index
    %37 = arith.index_cast %36 : i32 to index
    %c0_26 = arith.constant 0 : index
    %c0_27 = arith.constant 0 : index
    %38 = vector.load %arg2[%c0_24, %c3_25, %37, %c0_26, %c0_27] : memref<1x4x9x9x4xf32, #tpu.memory_space<vmem>>, vector<1x1x8x8x4xf32>
    %39 = vector.shape_cast %38 : vector<1x1x8x8x4xf32> to vector<8x8x4xf32>
    %c4 = arith.constant 4 : index
    %c0_28 = arith.constant 0 : index
    %40 = vector.load %arg3[%c4, %c0_28] : memref<9x4xf32, #tpu.memory_space<vmem>>, vector<1x4xf32>
    %41 = vector.shape_cast %40 : vector<1x4xf32> to vector<1x1x4xf32>
    %42 = vector.broadcast %41 : vector<1x1x4xf32> to vector<8x8x4xf32>
    %43 = arith.mulf %39, %42 : vector<8x8x4xf32>
    %44 = arith.addf %35, %43 : vector<8x8x4xf32>
    %c0_i32_29 = arith.constant 0 : i32
    %45 = arith.addi %0, %c0_i32_29 : i32
    %c0_30 = arith.constant 0 : index
    %c2_31 = arith.constant 2 : index
    %46 = arith.index_cast %45 : i32 to index
    %c1_32 = arith.constant 1 : index
    %c0_33 = arith.constant 0 : index
    %47 = vector.load %arg2[%c0_30, %c2_31, %46, %c1_32, %c0_33] : memref<1x4x9x9x4xf32, #tpu.memory_space<vmem>>, vector<1x1x8x8x4xf32>
    %48 = vector.shape_cast %47 : vector<1x1x8x8x4xf32> to vector<8x8x4xf32>
    %c5 = arith.constant 5 : index
    %c0_34 = arith.constant 0 : index
    %49 = vector.load %arg3[%c5, %c0_34] : memref<9x4xf32, #tpu.memory_space<vmem>>, vector<1x4xf32>
    %50 = vector.shape_cast %49 : vector<1x4xf32> to vector<1x1x4xf32>
    %51 = vector.broadcast %50 : vector<1x1x4xf32> to vector<8x8x4xf32>
    %52 = arith.mulf %48, %51 : vector<8x8x4xf32>
    %53 = arith.addf %44, %52 : vector<8x8x4xf32>
    %c1_i32 = arith.constant 1 : i32
    %54 = arith.addi %0, %c1_i32 : i32
    %c0_35 = arith.constant 0 : index
    %c0_36 = arith.constant 0 : index
    %55 = arith.index_cast %54 : i32 to index
    %c0_37 = arith.constant 0 : index
    %c0_38 = arith.constant 0 : index
    %56 = vector.load %arg2[%c0_35, %c0_36, %55, %c0_37, %c0_38] : memref<1x4x9x9x4xf32, #tpu.memory_space<vmem>>, vector<1x1x8x8x4xf32>
    %57 = vector.shape_cast %56 : vector<1x1x8x8x4xf32> to vector<8x8x4xf32>
    %c6 = arith.constant 6 : index
    %c0_39 = arith.constant 0 : index
    %58 = vector.load %arg3[%c6, %c0_39] : memref<9x4xf32, #tpu.memory_space<vmem>>, vector<1x4xf32>
    %59 = vector.shape_cast %58 : vector<1x4xf32> to vector<1x1x4xf32>
    %60 = vector.broadcast %59 : vector<1x1x4xf32> to vector<8x8x4xf32>
    %61 = arith.mulf %57, %60 : vector<8x8x4xf32>
    %62 = arith.addf %53, %61 : vector<8x8x4xf32>
    %c1_i32_40 = arith.constant 1 : i32
    %63 = arith.addi %0, %c1_i32_40 : i32
    %c0_41 = arith.constant 0 : index
    %c1_42 = arith.constant 1 : index
    %64 = arith.index_cast %63 : i32 to index
    %c0_43 = arith.constant 0 : index
    %c0_44 = arith.constant 0 : index
    %65 = vector.load %arg2[%c0_41, %c1_42, %64, %c0_43, %c0_44] : memref<1x4x9x9x4xf32, #tpu.memory_space<vmem>>, vector<1x1x8x8x4xf32>
    %66 = vector.shape_cast %65 : vector<1x1x8x8x4xf32> to vector<8x8x4xf32>
    %c7 = arith.constant 7 : index
    %c0_45 = arith.constant 0 : index
    %67 = vector.load %arg3[%c7, %c0_45] : memref<9x4xf32, #tpu.memory_space<vmem>>, vector<1x4xf32>
    %68 = vector.shape_cast %67 : vector<1x4xf32> to vector<1x1x4xf32>
    %69 = vector.broadcast %68 : vector<1x1x4xf32> to vector<8x8x4xf32>
    %70 = arith.mulf %66, %69 : vector<8x8x4xf32>
    %71 = arith.addf %62, %70 : vector<8x8x4xf32>
    %c1_i32_46 = arith.constant 1 : i32
    %72 = arith.addi %0, %c1_i32_46 : i32
    %c0_47 = arith.constant 0 : index
    %c0_48 = arith.constant 0 : index
    %73 = arith.index_cast %72 : i32 to index
    %c1_49 = arith.constant 1 : index
    %c0_50 = arith.constant 0 : index
    %74 = vector.load %arg2[%c0_47, %c0_48, %73, %c1_49, %c0_50] : memref<1x4x9x9x4xf32, #tpu.memory_space<vmem>>, vector<1x1x8x8x4xf32>
    %75 = vector.shape_cast %74 : vector<1x1x8x8x4xf32> to vector<8x8x4xf32>
    %c8 = arith.constant 8 : index
    %c0_51 = arith.constant 0 : index
    %76 = vector.load %arg3[%c8, %c0_51] : memref<9x4xf32, #tpu.memory_space<vmem>>, vector<1x4xf32>
    %77 = vector.shape_cast %76 : vector<1x4xf32> to vector<1x1x4xf32>
    %78 = vector.broadcast %77 : vector<1x1x4xf32> to vector<8x8x4xf32>
    %79 = arith.mulf %75, %78 : vector<8x8x4xf32>
    %80 = arith.addf %71, %79 : vector<8x8x4xf32>
    %81 = vector.shape_cast %80 : vector<8x8x4xf32> to vector<64x4xf32>
    %c0_52 = arith.constant 0 : index
    %c0_53 = arith.constant 0 : index
    %82 = vector.load %arg4[%c0_52, %c0_53] : memref<4x4xf32, #tpu.memory_space<vmem>>, vector<4x4xf32>
    %cst = arith.constant dense<0.000000e+00> : vector<4x64xf32>
    %83 = tpu.matmul %82, %81, %cst {dimension_numbers = #tpu.dot_dimension_numbers<[1], [1], [0], [0], [0, 0, 1, 0], [], []>} : vector<4x4xf32>, vector<64x4xf32>, vector<4x64xf32> -> vector<4x64xf32>
    %c0_54 = arith.constant 0 : index
    %c0_55 = arith.constant 0 : index
    %84 = vector.load %arg5[%c0_54, %c0_55] : memref<4x1xf32, #tpu.memory_space<vmem>>, vector<4x1xf32>
    %85 = vector.broadcast %84 : vector<4x1xf32> to vector<4x64xf32>
    %86 = arith.addf %83, %85 : vector<4x64xf32>
    %cst_56 = arith.constant 0.000000e+00 : f32
    %87 = vector.broadcast %cst_56 : f32 to vector<4x64xf32>
    %88 = arith.maximumf %86, %87 : vector<4x64xf32>
    %c0_57 = arith.constant 0 : index
    %c0_58 = arith.constant 0 : index
    %89 = vector.load %arg6[%c0_57, %c0_58] : memref<8x4xf32, #tpu.memory_space<vmem>>, vector<8x4xf32>
    %cst_59 = arith.constant dense<0.000000e+00> : vector<8x64xf32>
    %90 = tpu.matmul %89, %88, %cst_59 {dimension_numbers = #tpu.dot_dimension_numbers<[1], [0], [0], [1], [0, 0, 1, 1], [], []>} : vector<8x4xf32>, vector<4x64xf32>, vector<8x64xf32> -> vector<8x64xf32>
    %c0_60 = arith.constant 0 : index
    %c0_61 = arith.constant 0 : index
    %c0_62 = arith.constant 0 : index
    %91 = vector.load %arg7[%c0_60, %c0_61, %c0_62] : memref<1x8x64xf32, #tpu.memory_space<vmem>>, vector<1x8x64xf32>
    %92 = vector.shape_cast %91 : vector<1x8x64xf32> to vector<8x64xf32>
    %93 = vector.shape_cast %90 : vector<8x64xf32> to vector<1x8x64xf32>
    tpu.vector_store %arg7[%c0_60, %c0_61, %c0_62], %93 {strides = array<i32>} : memref<1x8x64xf32, #tpu.memory_space<vmem>>, vector<1x8x64xf32>,
    return
  }
  func.func @transform_0(%arg0: i32, %arg1: i32) -> (i32, i32, i32, i32, i32) {
    %c0_i32 = arith.constant 0 : i32
    %c0_i32_0 = arith.constant 0 : i32
    %c0_i32_1 = arith.constant 0 : i32
    %c0_i32_2 = arith.constant 0 : i32
    %c0_i32_3 = arith.constant 0 : i32
    return %arg0, %c0_i32, %c0_i32_0, %c0_i32_1, %c0_i32_2 : i32, i32, i32, i32, i32
  }
  func.func @transform_1(%arg0: i32, %arg1: i32) -> (i32, i32) {
    %c0_i32 = arith.constant 0 : i32
    %c0_i32_0 = arith.constant 0 : i32
    %c0_i32_1 = arith.constant 0 : i32
    return %c0_i32, %c0_i32_0 : i32, i32
  }
  func.func @transform_2(%arg0: i32, %arg1: i32) -> (i32, i32) {
    %c0_i32 = arith.constant 0 : i32
    %c0_i32_0 = arith.constant 0 : i32
    %c0_i32_1 = arith.constant 0 : i32
    return %c0_i32, %c0_i32_0 : i32, i32
  }
  func.func @transform_3(%arg0: i32, %arg1: i32) -> (i32, i32) {
    %c0_i32 = arith.constant 0 : i32
    %c0_i32_0 = arith.constant 0 : i32
    %c0_i32_1 = arith.constant 0 : i32
    return %c0_i32, %c0_i32_0 : i32, i32
  }
  func.func @transform_4(%arg0: i32, %arg1: i32) -> (i32, i32) {
    %c0_i32 = arith.constant 0 : i32
    %c0_i32_0 = arith.constant 0 : i32
    %c0_i32_1 = arith.constant 0 : i32
    return %c0_i32, %c0_i32_0 : i32, i32
  }
  func.func @transform_5(%arg0: i32, %arg1: i32) -> (i32, i32, i32) {
    %c0_i32 = arith.constant 0 : i32
    %c0_i32_0 = arith.constant 0 : i32
    return %arg0, %c0_i32, %arg1 : i32, i32, i32
  }
}

</mosaic_0001>

<llo_original>
// kernel: tpu_custom_call.1
$region0: #{tpu_custom_call.1}
  #allocation0 [shape = 'u32[]', space=smem, size = 0x4, offset = 0x4, fixed_abs, tag = 'smem constant byte address 0x4 - core index']
  #allocation1 [shape = 'u32[144,128]{1,0:T(1,128)}', space=vmem, size = 0x12000, scoped, tag = 'internal scratch']
  %s0 = inlined_call_operand.vmem [shape: f32[2,4,9,9,4], index: 0, kind: input, shape index: {}]
  %s1 = inlined_call_operand.vmem [shape: f32[9,4], index: 1, kind: input, shape index: {}]
  %s2 = inlined_call_operand.vmem [shape: f32[4,4], index: 2, kind: input, shape index: {}]
  %s3 = inlined_call_operand.vmem [shape: f32[4,1], index: 3, kind: input, shape index: {}]
  %s4 = inlined_call_operand.vmem [shape: f32[8,4], index: 4, kind: input, shape index: {}]
  %s5 = inlined_call_operand.hbm [shape: f32[2,8,64], index: 5, kind: output, shape index: {}]
  %s6 = sld [smem:[#allocation0]]
  $region53: #{tpu_custom_call.1} parent=0
    _
  %s8 = ssub.s32 1, %s6
  %s9 = scalar_select 0, %s8, %s6
  $region1: #{tpu_custom_call.1} parent=0
    #allocation2 [shape = 'u8[8192]{0}', space=vmem, size = 0x2000, scoped, tag = 'output window, operand 0']
    #allocation3 [shape = 's32[2]{0}', space=sflag, size = 0x8, scoped, tag = 'scoped memory for tpu_custom_call.1']
    %10 = vsyncpa [#allocation3], 0
    %s11 = scalar_lea.sflag [#allocation3], 1
    %12 = vsyncpa %s11, 0
    loop: start=0, step=1, limit=4
    $region2: #{tpu_custom_call.1} parent=1 // loop_pre_header
      _
    $region3: #{tpu_custom_call.1} parent=1 // loop_header
      %s14 = sphi 0, %s18
      %p15 = scmp.ge.s32.totalorder %s14, 4
      %s21 = sphi 0, %s33
      %s22 = sphi 0, %s29
      %s23 = sphi 0, %s21
      %s24 = sphi 0, %s22
      %s25 = sphi 0, %s23
      %s26 = sphi 0, %s24
      %s36 = sphi 0, %s38
      %s39 = sphi 0, %s36
      %s40 = sphi 0, %s39
      %s56 = sphi 0, %s40
      %s60 = sphi 0, %s60
      %s62 = sphi 0, %s60
      %s63 = sphi 0, %s62
      %s77 = sphi 0, %s63
      %s81 = sphi 0, %s81
      %s83 = sphi 0, %s81
      %s84 = sphi 0, %s83
      %s98 = sphi 0, %s84
      %s102 = sphi 0, %s102
      %s104 = sphi 0, %s102
      %s105 = sphi 0, %s104
      %s119 = sphi 0, %s105
      %s123 = sphi 0, %s123
      %s125 = sphi 0, %s123
      %s126 = sphi 0, %s125
      %s140 = sphi 0, %s126
      %s148 = sphi 0, %s150
      %s151 = sphi 0, %s148
      %s152 = sphi 0, %s151
      %s168 = sphi 0, %s152
    $region4: #{tpu_custom_call.1} parent=1 // loop_header_branch
      %17 = sbr.rel (%p15) target = $region8
    $region5: #{tpu_custom_call.1} parent=1 // loop_body
      %s19 = ssub.s32 %s14, 1
      %s20 = ssub.s32 %s14, 2
      %s27 = sadd.s32 1, %s22
      %p28 = scmp.ge.s32.totalorder %s27, 1
      %s29 = scalar_select %p28, 0, %s27
      %s30 = sadd.s32 1, %s21
      %s31 = scalar_select %p28, %s30, %s21
      %p32 = scmp.ge.s32.totalorder %s31, 2
      %s33 = scalar_select %p32, 0, %s31
      %s34 = ssub.s32 %s21, %s33
      %p35 = scmp.eq.s32.totalorder %s34, 0
      %s37 = sadd.s32 %s36, 1
      %s38 = scalar_select %p35, %s36, %s37
      %p41 = pneg %p35
      %p42 = scmp.eq.s32.totalorder %s14, 1
      %p43 = por %p41, %p42
      %p44 = scmp.ne.s32.totalorder %s36, %s39
      %p45 = scmp.eq.s32.totalorder %s14, 0
      %p46 = por %p44, %p45
      %p47 = scmp.ne.s32.totalorder %s36, %s39
      %p48 = scmp.eq.s32.totalorder %s19, 1
      %p49 = por %p47, %p48
      %p50 = scmp.ne.s32.totalorder %s39, %s40
      %p51 = scmp.eq.s32.totalorder %s19, 0
      %p52 = por %p50, %p51
      %p53 = scmp.ne.s32.totalorder %s39, %s40
      %p54 = scmp.eq.s32.totalorder %s20, 1
      %p55 = por %p53, %p54
      %p57 = scmp.ne.s32.totalorder %s40, %s56
      %p58 = scmp.eq.s32.totalorder %s20, 0
      %p59 = por %p57, %p58
      %s61 = sadd.s32 %s60, 1
      %p64 = scmp.eq.s32.totalorder %s14, 1
      %p65 = scmp.ne.s32.totalorder %s60, %s62
      %p66 = scmp.eq.s32.totalorder %s14, 0
      %p67 = por %p65, %p66
      %p68 = scmp.ne.s32.totalorder %s60, %s62
      %p69 = scmp.eq.s32.totalorder %s19, 1
      %p70 = por %p68, %p69
      %p71 = scmp.ne.s32.totalorder %s62, %s63
      %p72 = scmp.eq.s32.totalorder %s19, 0
      %p73 = por %p71, %p72
      %p74 = scmp.ne.s32.totalorder %s62, %s63
      %p75 = scmp.eq.s32.totalorder %s20, 1
      %p76 = por %p74, %p75
      %p78 = scmp.ne.s32.totalorder %s63, %s77
      %p79 = scmp.eq.s32.totalorder %s20, 0
      %p80 = por %p78, %p79
      %s82 = sadd.s32 %s81, 1
      %p85 = scmp.eq.s32.totalorder %s14, 1
      %p86 = scmp.ne.s32.totalorder %s81, %s83
      %p87 = scmp.eq.s32.totalorder %s14, 0
      %p88 = por %p86, %p87
      %p89 = scmp.ne.s32.totalorder %s81, %s83
      %p90 = scmp.eq.s32.totalorder %s19, 1
      %p91 = por %p89, %p90
      %p92 = scmp.ne.s32.totalorder %s83, %s84
      %p93 = scmp.eq.s32.totalorder %s19, 0
      %p94 = por %p92, %p93
      %p95 = scmp.ne.s32.totalorder %s83, %s84
      %p96 = scmp.eq.s32.totalorder %s20, 1
      %p97 = por %p95, %p96
      %p99 = scmp.ne.s32.totalorder %s84, %s98
      %p100 = scmp.eq.s32.totalorder %s20, 0
      %p101 = por %p99, %p100
      %s103 = sadd.s32 %s102, 1
      %p106 = scmp.eq.s32.totalorder %s14, 1
      %p107 = scmp.ne.s32.totalorder %s102, %s104
      %p108 = scmp.eq.s32.totalorder %s14, 0
      %p109 = por %p107, %p108
      %p110 = scmp.ne.s32.totalorder %s102, %s104
      %p111 = scmp.eq.s32.totalorder %s19, 1
      %p112 = por %p110, %p111
      %p113 = scmp.ne.s32.totalorder %s104, %s105
      %p114 = scmp.eq.s32.totalorder %s19, 0
      %p115 = por %p113, %p114
      %p116 = scmp.ne.s32.totalorder %s104, %s105
      %p117 = scmp.eq.s32.totalorder %s20, 1
      %p118 = por %p116, %p117
      %p120 = scmp.ne.s32.totalorder %s105, %s119
      %p121 = scmp.eq.s32.totalorder %s20, 0
      %p122 = por %p120, %p121
      %s124 = sadd.s32 %s123, 1
      %p127 = scmp.eq.s32.totalorder %s14, 1
      %p128 = scmp.ne.s32.totalorder %s123, %s125
      %p129 = scmp.eq.s32.totalorder %s14, 0
      %p130 = por %p128, %p129
      %p131 = scmp.ne.s32.totalorder %s123, %s125
      %p132 = scmp.eq.s32.totalorder %s19, 1
      %p133 = por %p131, %p132
      %p134 = scmp.ne.s32.totalorder %s125, %s126
      %p135 = scmp.eq.s32.totalorder %s19, 0
      %p136 = por %p134, %p135
      %p137 = scmp.ne.s32.totalorder %s125, %s126
      %p138 = scmp.eq.s32.totalorder %s20, 1
      %p139 = por %p137, %p138
      %p141 = scmp.ne.s32.totalorder %s126, %s140
      %p142 = scmp.eq.s32.totalorder %s20, 0
      %p143 = por %p141, %p142
      %s144 = ssub.s32 %s21, %s33
      %s145 = ssub.s32 %s22, %s29
      %s146 = sor.u32 %s144, %s145
      %p147 = scmp.eq.s32.totalorder %s146, 0
      %s149 = sadd.s32 %s148, 1
      %s150 = scalar_select %p147, %s148, %s149
      %p153 = pneg %p147
      %p154 = scmp.eq.s32.totalorder %s14, 1
      %p155 = por %p153, %p154
      %p156 = scmp.ne.s32.totalorder %s148, %s151
      %p157 = scmp.eq.s32.totalorder %s14, 0
      %p158 = por %p156, %p157
      %p159 = scmp.ne.s32.totalorder %s148, %s151
      %p160 = scmp.eq.s32.totalorder %s19, 1
      %p161 = por %p159, %p160
      %p162 = scmp.ne.s32.totalorder %s151, %s152
      %p163 = scmp.eq.s32.totalorder %s19, 0
      %p164 = por %p162, %p163
      %p165 = scmp.ne.s32.totalorder %s151, %s152
      %p166 = scmp.eq.s32.totalorder %s20, 1
      %p167 = por %p165, %p166
      %p169 = scmp.ne.s32.totalorder %s152, %s168
      %p170 = scmp.eq.s32.totalorder %s20, 0
      %p171 = por %p169, %p170
      %p172 = scmp.le.s32.totalorder 1, %s14
      %p173 = scmp.lt.s32.totalorder %s14, 3
      %p174 = pnand %p172, %p173
      %p175 = pneg %p174
      // Predicated region
      $region9: #{tpu_custom_call.1} parent=5 // pred_check
        _
      $region10: #{tpu_custom_call.1} parent=5 // pred_check_branch
        %177 = sbr.rel (%p174) target = $region12
      $region11: #{tpu_custom_call.1} parent=5 // pred_region
        %s178 = ssub.s32 %s14, 1
        // Predicated region
        $region13: #{tpu_custom_call.1} parent=11 // pred_check
          %p179 = pneg %p73
        $region14: #{tpu_custom_call.1} parent=11 // pred_check_branch
          %181 = sbr.rel (%p179) target = $region16
        $region15: #{tpu_custom_call.1} parent=11 // pred_region
          _
        $region16: #{tpu_custom_call.1} parent=11 // pred_fallthru
          _
        // Predicated region
        $region17: #{tpu_custom_call.1} parent=11 // pred_check
          %p182 = pneg %p94
        $region18: #{tpu_custom_call.1} parent=11 // pred_check_branch
          %184 = sbr.rel (%p182) target = $region20
        $region19: #{tpu_custom_call.1} parent=11 // pred_region
          _
        $region20: #{tpu_custom_call.1} parent=11 // pred_fallthru
          _
        // Predicated region
        $region21: #{tpu_custom_call.1} parent=11 // pred_check
          %p185 = pneg %p115
        $region22: #{tpu_custom_call.1} parent=11 // pred_check_branch
          %187 = sbr.rel (%p185) target = $region24
        $region23: #{tpu_custom_call.1} parent=11 // pred_region
          _
        $region24: #{tpu_custom_call.1} parent=11 // pred_fallthru
          _
        // Predicated region
        $region25: #{tpu_custom_call.1} parent=11 // pred_check
          %p188 = pneg %p136
        $region26: #{tpu_custom_call.1} parent=11 // pred_check_branch
          %190 = sbr.rel (%p188) target = $region28
        $region27: #{tpu_custom_call.1} parent=11 // pred_region
          _
        $region28: #{tpu_custom_call.1} parent=11 // pred_fallthru
          _
      $region12: #{tpu_custom_call.1} parent=5 // pred_fallthru
        _
      %p191 = scmp.lt.s32.totalorder %s14, 2
      // Predicated region
      $region29: #{tpu_custom_call.1} parent=5 // pred_check
        %p192 = pneg %p191
      $region30: #{tpu_custom_call.1} parent=5 // pred_check_branch
        %194 = sbr.rel (%p192) target = $region32
      $region31: #{tpu_custom_call.1} parent=5 // pred_region
        // Predicated region
        $region33: #{tpu_custom_call.1} parent=31 // pred_check
          %p195 = pneg %p46
        $region34: #{tpu_custom_call.1} parent=31 // pred_check_branch
          %197 = sbr.rel (%p195) target = $region36
        $region35: #{tpu_custom_call.1} parent=31 // pred_region
          %p198 = scmp.lt.s32.totalorder %s21, 1
          %s199 = scalar_select %p198, %s21, 1
          %s200 = smul.addr %s199, 72
          %s201 = smul.addr %s200, 8
          %s202 = scalar_lea.vmem %s0, %s201
        $region36: #{tpu_custom_call.1} parent=31 // pred_fallthru
          _
      $region32: #{tpu_custom_call.1} parent=5 // pred_fallthru
        _
      %p203 = scmp.le.s32.totalorder 1, %s14
      %p204 = scmp.lt.s32.totalorder %s14, 3
      %p205 = pnand %p203, %p204
      %p206 = pneg %p205
      // Predicated region
      $region37: #{tpu_custom_call.1} parent=5 // pred_check
        _
      $region38: #{tpu_custom_call.1} parent=5 // pred_check_branch
        %208 = sbr.rel (%p205) target = $region40
      $region39: #{tpu_custom_call.1} parent=5 // pred_region
        %s209 = ssub.s32 %s14, 1
        %p210 = scmp.lt.s32.totalorder %s23, 1
        %s211 = scalar_select %p210, %s23, 1
        %s212 = smul.addr %s211, 72
        %s213 = smul.addr %s212, 8
        %s214 = scalar_lea.vmem %s0, %s213
        %p215 = pneg %p52
        %p216 = pneg %p49
        %p217 = pneg %p73
        %p218 = pneg %p70
        %p219 = pneg %p94
        %p220 = pneg %p91
        %p221 = pneg %p115
        %p222 = pneg %p112
        %p223 = pneg %p136
        %p224 = pneg %p133
        %p225 = pneg %p164
        %p226 = pneg %p161
        %s227 = sand.u32 %s151, 1
        %s228 = scalar_lea.sflag [#allocation3], %s227
        %s229 = sand.u32 %s151, 1
        %s230 = smul.addr %s229, 8
        %s231 = scalar_lea.vmem [#allocation2], %s230
        %p232 = scmp.lt.s32.totalorder %s23, 1
        %s233 = scalar_select %p232, %s23, 1
        %s234 = smul.addr %s233, 72
        %s235 = smul.addr %s234, 8
        %s236 = scalar_lea.vmem %s0, %s235
        %s237 = smul.u32 %s24, 8
        %s238 = smul.u32 %s237, 16
        %s239 = scalar_lea.vmem %s236, %s238
        %v240 = vld [vmem:[%s239] sm:$0xff]
        %v241 = vld [vmem:[%s239 + $0x10] sm:$0xff]
        %v242 = vld [vmem:[%s239 + $0x20] sm:$0xff]
        %v243 = vld [vmem:[%s239 + $0x30] sm:$0xff]
        %v244 = vld [vmem:[%s239 + $0x40] sm:$0xff]
        %v245 = vld [vmem:[%s239 + $0x50] sm:$0xff]
        %v246 = vld [vmem:[%s239 + $0x60] sm:$0xff]
        %v247 = vld [vmem:[%s239 + $0x70] sm:$0xff]
        %v248 = vld [vmem:[%s1] sm:$0x1]
        %v249 = vlaneseq
        %v250 = vshrl.u32 %v249, 7
        %v251 = vsub.s32 0, %v250
        %v252 = vrot.slane %v248, %v251
        %v253 = vmul.f32 %v240, %v252
        %v254 = vmul.f32 %v241, %v252
        %v255 = vmul.f32 %v242, %v252
        %v256 = vmul.f32 %v243, %v252
        %v257 = vmul.f32 %v244, %v252
        %v258 = vmul.f32 %v245, %v252
        %v259 = vmul.f32 %v246, %v252
        %v260 = vmul.f32 %v247, %v252
        %s261 = sadd.s32 %s238, 144
        %s262 = scalar_lea.vmem %s236, %s261
        %v263 = vld [vmem:[%s262] sm:$0xff]
        %v264 = vld [vmem:[%s262 + $0x10] sm:$0xff]
        %v265 = vld [vmem:[%s262 + $0x20] sm:$0xff]
        %v266 = vld [vmem:[%s262 + $0x30] sm:$0xff]
        %v267 = vld [vmem:[%s262 + $0x40] sm:$0xff]
        %v268 = vld [vmem:[%s262 + $0x50] sm:$0xff]
        %v269 = vld [vmem:[%s262 + $0x60] sm:$0xff]
        %v270 = vld [vmem:[%s262 + $0x70] sm:$0xff]
        %v271 = vld [vmem:[%s1 + $0x1] sm:$0x1]
        %v272 = vlaneseq
        %v273 = vshrl.u32 %v272, 7
        %v274 = vsub.s32 0, %v273
        %v275 = vrot.slane %v271, %v274
        %v276 = vmul.f32 %v263, %v275
        %v277 = vmul.f32 %v264, %v275
        %v278 = vmul.f32 %v265, %v275
        %v279 = vmul.f32 %v266, %v275
        %v280 = vmul.f32 %v267, %v275
        %v281 = vmul.f32 %v268, %v275
        %v282 = vmul.f32 %v269, %v275
        %v283 = vmul.f32 %v270, %v275
        %v284 = vadd.f32 %v253, %v276
        %v285 = vadd.f32 %v254, %v277
        %v286 = vadd.f32 %v255, %v278
        %v287 = vadd.f32 %v256, %v279
        %v288 = vadd.f32 %v257, %v280
        %v289 = vadd.f32 %v258, %v281
        %v290 = vadd.f32 %v259, %v282
        %v291 = vadd.f32 %v260, %v283
        %v292 = vld [vmem:[%s239 + $0x1] sm:$0xff]
        %v293 = vld [vmem:[%s239 + $0x11] sm:$0xff]
        %v294 = vld [vmem:[%s239 + $0x21] sm:$0xff]
        %v295 = vld [vmem:[%s239 + $0x31] sm:$0xff]
        %v296 = vld [vmem:[%s239 + $0x41] sm:$0xff]
        %v297 = vld [vmem:[%s239 + $0x51] sm:$0xff]
        %v298 = vld [vmem:[%s239 + $0x61] sm:$0xff]
        %v299 = vld [vmem:[%s239 + $0x71] sm:$0xff]
        %v300 = vld [vmem:[%s1 + $0x2] sm:$0x1]
        %v301 = vlaneseq
        %v302 = vshrl.u32 %v301, 7
        %v303 = vsub.s32 0, %v302
        %v304 = vrot.slane %v300, %v303
        %v305 = vmul.f32 %v292, %v304
        %v306 = vmul.f32 %v293, %v304
        %v307 = vmul.f32 %v294, %v304
        %v308 = vmul.f32 %v295, %v304
        %v309 = vmul.f32 %v296, %v304
        %v310 = vmul.f32 %v297, %v304
        %v311 = vmul.f32 %v298, %v304
        %v312 = vmul.f32 %v299, %v304
        %v313 = vadd.f32 %v284, %v305
        %v314 = vadd.f32 %v285, %v306
        %v315 = vadd.f32 %v286, %v307
        %v316 = vadd.f32 %v287, %v308
        %v317 = vadd.f32 %v288, %v309
        %v318 = vadd.f32 %v289, %v310
        %v319 = vadd.f32 %v290, %v311
        %v320 = vadd.f32 %v291, %v312
        %s321 = sadd.s32 %s238, 288
        %s322 = scalar_lea.vmem %s236, %s321
        %v323 = vld [vmem:[%s322] sm:$0xff]
        %v324 = vld [vmem:[%s322 + $0x10] sm:$0xff]
        %v325 = vld [vmem:[%s322 + $0x20] sm:$0xff]
        %v326 = vld [vmem:[%s322 + $0x30] sm:$0xff]
        %v327 = vld [vmem:[%s322 + $0x40] sm:$0xff]
        %v328 = vld [vmem:[%s322 + $0x50] sm:$0xff]
        %v329 = vld [vmem:[%s322 + $0x60] sm:$0xff]
        %v330 = vld [vmem:[%s322 + $0x70] sm:$0xff]
        %v331 = vld [vmem:[%s1 + $0x3] sm:$0x1]
        %v332 = vlaneseq
        %v333 = vshrl.u32 %v332, 7
        %v334 = vsub.s32 0, %v333
        %v335 = vrot.slane %v331, %v334
        %v336 = vmul.f32 %v323, %v335
        %v337 = vmul.f32 %v324, %v335
        %v338 = vmul.f32 %v325, %v335
        %v339 = vmul.f32 %v326, %v335
        %v340 = vmul.f32 %v327, %v335
        %v341 = vmul.f32 %v328, %v335
        %v342 = vmul.f32 %v329, %v335
        %v343 = vmul.f32 %v330, %v335
        %v344 = vadd.f32 %v313, %v336
        %v345 = vadd.f32 %v314, %v337
        %v346 = vadd.f32 %v315, %v338
        %v347 = vadd.f32 %v316, %v339
        %v348 = vadd.f32 %v317, %v340
        %v349 = vadd.f32 %v318, %v341
        %v350 = vadd.f32 %v319, %v342
        %v351 = vadd.f32 %v320, %v343
        %s352 = sadd.s32 %s238, 432
        %s353 = scalar_lea.vmem %s236, %s352
        %v354 = vld [vmem:[%s353] sm:$0xff]
        %v355 = vld [vmem:[%s353 + $0x10] sm:$0xff]
        %v356 = vld [vmem:[%s353 + $0x20] sm:$0xff]
        %v357 = vld [vmem:[%s353 + $0x30] sm:$0xff]
        %v358 = vld [vmem:[%s353 + $0x40] sm:$0xff]
        %v359 = vld [vmem:[%s353 + $0x50] sm:$0xff]
        %v360 = vld [vmem:[%s353 + $0x60] sm:$0xff]
        %v361 = vld [vmem:[%s353 + $0x70] sm:$0xff]
        %v362 = vld [vmem:[%s1 + $0x4] sm:$0x1]
        %v363 = vlaneseq
        %v364 = vshrl.u32 %v363, 7
        %v365 = vsub.s32 0, %v364
        %v366 = vrot.slane %v362, %v365
        %v367 = vmul.f32 %v354, %v366
        %v368 = vmul.f32 %v355, %v366
        %v369 = vmul.f32 %v356, %v366
        %v370 = vmul.f32 %v357, %v366
        %v371 = vmul.f32 %v358, %v366
        %v372 = vmul.f32 %v359, %v366
        %v373 = vmul.f32 %v360, %v366
        %v374 = vmul.f32 %v361, %v366
        %v375 = vadd.f32 %v344, %v367
        %v376 = vadd.f32 %v345, %v368
        %v377 = vadd.f32 %v346, %v369
        %v378 = vadd.f32 %v347, %v370
        %v379 = vadd.f32 %v348, %v371
        %v380 = vadd.f32 %v349, %v372
        %v381 = vadd.f32 %v350, %v373
        %v382 = vadd.f32 %v351, %v374
        %v383 = vld [vmem:[%s322 + $0x1] sm:$0xff]
        %v384 = vld [vmem:[%s322 + $0x11] sm:$0xff]
        %v385 = vld [vmem:[%s322 + $0x21] sm:$0xff]
        %v386 = vld [vmem:[%s322 + $0x31] sm:$0xff]
        %v387 = vld [vmem:[%s322 + $0x41] sm:$0xff]
        %v388 = vld [vmem:[%s322 + $0x51] sm:$0xff]
        %v389 = vld [vmem:[%s322 + $0x61] sm:$0xff]
        %v390 = vld [vmem:[%s322 + $0x71] sm:$0xff]
        %v391 = vld [vmem:[%s1 + $0x5] sm:$0x1]
        %v392 = vlaneseq
        %v393 = vshrl.u32 %v392, 7
        %v394 = vsub.s32 0, %v393
        %v395 = vrot.slane %v391, %v394
        %v396 = vmul.f32 %v383, %v395
        %v397 = vmul.f32 %v384, %v395
        %v398 = vmul.f32 %v385, %v395
        %v399 = vmul.f32 %v386, %v395
        %v400 = vmul.f32 %v387, %v395
        %v401 = vmul.f32 %v388, %v395
        %v402 = vmul.f32 %v389, %v395
        %v403 = vmul.f32 %v390, %v395
        %v404 = vadd.f32 %v375, %v396
        %v405 = vadd.f32 %v376, %v397
        %v406 = vadd.f32 %v377, %v398
        %v407 = vadd.f32 %v378, %v399
        %v408 = vadd.f32 %v379, %v400
        %v409 = vadd.f32 %v380, %v401
        %v410 = vadd.f32 %v381, %v402
        %v411 = vadd.f32 %v382, %v403
        %s412 = sadd.s32 %s237, 1
        %s413 = smul.u32 %s412, 16
        %s414 = scalar_lea.vmem %s236, %s413
        %v415 = vld [vmem:[%s414] sm:$0xff]
        %v416 = vld [vmem:[%s414 + $0x10] sm:$0xff]
        %v417 = vld [vmem:[%s414 + $0x20] sm:$0xff]
        %v418 = vld [vmem:[%s414 + $0x30] sm:$0xff]
        %v419 = vld [vmem:[%s414 + $0x40] sm:$0xff]
        %v420 = vld [vmem:[%s414 + $0x50] sm:$0xff]
        %v421 = vld [vmem:[%s414 + $0x60] sm:$0xff]
        %v422 = vld [vmem:[%s414 + $0x70] sm:$0xff]
        %v423 = vld [vmem:[%s1 + $0x6] sm:$0x1]
        %v424 = vlaneseq
        %v425 = vshrl.u32 %v424, 7
        %v426 = vsub.s32 0, %v425
        %v427 = vrot.slane %v423, %v426
        %v428 = vmul.f32 %v415, %v427
        %v429 = vmul.f32 %v416, %v427
        %v430 = vmul.f32 %v417, %v427
        %v431 = vmul.f32 %v418, %v427
        %v432 = vmul.f32 %v419, %v427
        %v433 = vmul.f32 %v420, %v427
        %v434 = vmul.f32 %v421, %v427
        %v435 = vmul.f32 %v422, %v427
        %v436 = vadd.f32 %v404, %v428
        %v437 = vadd.f32 %v405, %v429
        %v438 = vadd.f32 %v406, %v430
        %v439 = vadd.f32 %v407, %v431
        %v440 = vadd.f32 %v408, %v432
        %v441 = vadd.f32 %v409, %v433
        %v442 = vadd.f32 %v410, %v434
        %v443 = vadd.f32 %v411, %v435
        %s444 = sadd.s32 %s413, 144
        %s445 = scalar_lea.vmem %s236, %s444
        %v446 = vld [vmem:[%s445] sm:$0xff]
        %v447 = vld [vmem:[%s445 + $0x10] sm:$0xff]
        %v448 = vld [vmem:[%s445 + $0x20] sm:$0xff]
        %v449 = vld [vmem:[%s445 + $0x30] sm:$0xff]
        %v450 = vld [vmem:[%s445 + $0x40] sm:$0xff]
        %v451 = vld [vmem:[%s445 + $0x50] sm:$0xff]
        %v452 = vld [vmem:[%s445 + $0x60] sm:$0xff]
        %v453 = vld [vmem:[%s445 + $0x70] sm:$0xff]
        %v454 = vld [vmem:[%s1 + $0x7] sm:$0x1]
        %v455 = vlaneseq
        %v456 = vshrl.u32 %v455, 7
        %v457 = vsub.s32 0, %v456
        %v458 = vrot.slane %v454, %v457
        %v459 = vmul.f32 %v446, %v458
        %v460 = vmul.f32 %v447, %v458
        %v461 = vmul.f32 %v448, %v458
        %v462 = vmul.f32 %v449, %v458
        %v463 = vmul.f32 %v450, %v458
        %v464 = vmul.f32 %v451, %v458
        %v465 = vmul.f32 %v452, %v458
        %v466 = vmul.f32 %v453, %v458
        %v467 = vadd.f32 %v436, %v459
        %v468 = vadd.f32 %v437, %v460
        %v469 = vadd.f32 %v438, %v461
        %v470 = vadd.f32 %v439, %v462
        %v471 = vadd.f32 %v440, %v463
        %v472 = vadd.f32 %v441, %v464
        %v473 = vadd.f32 %v442, %v465
        %v474 = vadd.f32 %v443, %v466
        %v475 = vld [vmem:[%s414 + $0x1] sm:$0xff]
        %v476 = vld [vmem:[%s414 + $0x11] sm:$0xff]
        %v477 = vld [vmem:[%s414 + $0x21] sm:$0xff]
        %v478 = vld [vmem:[%s414 + $0x31] sm:$0xff]
        %v479 = vld [vmem:[%s414 + $0x41] sm:$0xff]
        %v480 = vld [vmem:[%s414 + $0x51] sm:$0xff]
        %v481 = vld [vmem:[%s414 + $0x61] sm:$0xff]
        %v482 = vld [vmem:[%s414 + $0x71] sm:$0xff]
        %v483 = vld [vmem:[%s1 + $0x8] sm:$0x1]
        %v484 = vlaneseq
        %v485 = vshrl.u32 %v484, 7
        %v486 = vsub.s32 0, %v485
        %v487 = vrot.slane %v483, %v486
        %v488 = vmul.f32 %v475, %v487
        %v489 = vmul.f32 %v476, %v487
        %v490 = vmul.f32 %v477, %v487
        %v491 = vmul.f32 %v478, %v487
        %v492 = vmul.f32 %v479, %v487
        %v493 = vmul.f32 %v480, %v487
        %v494 = vmul.f32 %v481, %v487
        %v495 = vmul.f32 %v482, %v487
        %v496 = vadd.f32 %v467, %v488
        %v497 = vadd.f32 %v468, %v489
        %v498 = vadd.f32 %v469, %v490
        %v499 = vadd.f32 %v470, %v491
        %v500 = vadd.f32 %v471, %v492
        %v501 = vadd.f32 %v472, %v493
        %v502 = vadd.f32 %v473, %v494
        %v503 = vadd.f32 %v474, %v495
        %v504 = vld [vmem:[%s2] sm:$0xf]
        %v505 = vld [vmem:[%s3] sm:$0xf]
        %507 = vset.pattern.permute.xlu0 0
        %508 = vperm.xlu0 %507, %v505
        %v509 = vpop.permute.xlu0 %508
        %vm511 = vcmask 31744
        %v513 = vsel %vm511, %v504, 0
        %v516 = vsel %vm511, %v496, 0
        %v519 = vsel %vm511, %v497, 0
        %v522 = vsel %vm511, %v498, 0
        %v525 = vsel %vm511, %v499, 0
        %v528 = vsel %vm511, %v500, 0
        %v531 = vsel %vm511, %v501, 0
        %v534 = vsel %vm511, %v502, 0
        %v537 = vsel %vm511, %v503, 0
        %539 = vmatprep.subr.mxu0 0.0
        %540 = vmatpush1.xpose.msra.mxu0 %v516
        %541 = vmatprep.subr.mxu0 0.0
        %542 = vmatpush1.xpose.msra.mxu0 %v519
        %543 = vmatprep.subr.mxu0 0.0
        %544 = vmatpush1.xpose.msra.mxu0 %v522
        %545 = vmatprep.subr.mxu0 0.0
        %546 = vmatpush1.xpose.msra.mxu0 %v525
        %547 = vmatprep.subr.mxu0 0.0
        %548 = vmatpush1.xpose.msra.mxu0 %v528
        %549 = vmatprep.subr.mxu0 0.0
        %550 = vmatpush1.xpose.msra.mxu0 %v531
        %551 = vmatprep.subr.mxu0 0.0
        %552 = vmatpush1.xpose.msra.mxu0 %v534
        %553 = vmatprep.subr.mxu0 0.0
        %554 = vmatpush1.xpose.msra.mxu0 %v537
        %555 = vmatprep.subr.mxu0 0.0
        %556 = vmatpush1.xpose.msra.mxu0 0.0
        %557 = vmatprep.subr.mxu0 0.0
        %558 = vmatpush1.xpose.msra.mxu0 0.0
        %559 = vmatprep.subr.mxu0 0.0
        %560 = vmatpush1.xpose.msra.mxu0 0.0
        %561 = vmatprep.subr.mxu0 0.0
        %562 = vmatpush1.xpose.msra.mxu0 0.0
        %563 = vmatprep.subr.mxu0 0.0
        %564 = vmatpush1.xpose.msra.mxu0 0.0
        %565 = vmatprep.subr.mxu0 0.0
        %566 = vmatpush1.xpose.msra.mxu0 0.0
        %567 = vmatprep.subr.mxu0 0.0
        %568 = vmatpush1.xpose.msra.mxu0 0.0
        %569 = vmatprep.subr.mxu0 0.0
        %570 = vmatpush1.xpose.msra.mxu0 0.0
        %571 = vmatprep.subr.mxu0 0.0
        %572 = vmatpush1.xpose.msra.mxu0 0.0
        %573 = vmatprep.subr.mxu0 0.0
        %574 = vmatpush1.xpose.msra.mxu0 0.0
        %575 = vmatprep.subr.mxu0 0.0
        %576 = vmatpush1.xpose.msra.mxu0 0.0
        %577 = vmatprep.subr.mxu0 0.0
        %578 = vmatpush1.xpose.msra.mxu0 0.0
        %579 = vmatprep.subr.mxu0 0.0
        %580 = vmatpush1.xpose.msra.mxu0 0.0
        %581 = vmatprep.subr.mxu0 0.0
        %582 = vmatpush1.xpose.msra.mxu0 0.0
        %583 = vmatprep.subr.mxu0 0.0
        %584 = vmatpush1.xpose.msra.mxu0 0.0
        %585 = vmatprep.subr.mxu0 0.0
        %586 = vmatpush1.xpose.msra.mxu0 0.0
        %587 = vmatprep.subr.mxu0 0.0
        %588 = vmatpush1.xpose.msra.mxu0 0.0
        %589 = vmatprep.subr.mxu0 0.0
        %590 = vmatpush1.xpose.msra.mxu0 0.0
        %591 = vmatprep.subr.mxu0 0.0
        %592 = vmatpush1.xpose.msra.mxu0 0.0
        %593 = vmatprep.subr.mxu0 0.0
        %594 = vmatpush1.xpose.msra.mxu0 0.0
        %595 = vmatprep.subr.mxu0 0.0
        %596 = vmatpush1.xpose.msra.mxu0 0.0
        %597 = vmatprep.subr.mxu0 0.0
        %598 = vmatpush1.xpose.msra.mxu0 0.0
        %599 = vmatprep.subr.mxu0 0.0
        %600 = vmatpush1.xpose.msra.mxu0 0.0
        %601 = vmatprep.subr.mxu0 0.0
        %602 = vmatpush1.xpose.msra.mxu0 0.0
        %603 = vmatprep.mubr.f32.mxu0 0.0
        %604 = vmatmul.mubr.f32.gmra.mrb[0].mxu0 %v513
        %v605 = vpop.f32.mrb[0].mxu0
        %v606 = vadd.f32 %v509, %v605
        %v607 = vpop.f32.mrb[0].mxu0
        %608 = vdwg.mxu0
        %v609 = vmax.f32 %v606, 0.0
        %v610 = vld [vmem:[%s4] sm:$0xff]
        %v612 = vsel %vm511, %v610, 0
        %vm614 = vcmask 1043456
        %v616 = vsel %vm614, %v609, 0
        %618 = vmatprep.subr.mxu0 0.0
        %619 = vmatpush1.msra.mxu0 %v616
        %620 = vmatprep.subr.mxu0 0.0
        %621 = vmatpush1.msra.mxu0 0.0
        %622 = vmatprep.subr.mxu0 0.0
        %623 = vmatpush1.msra.mxu0 0.0
        %624 = vmatprep.subr.mxu0 0.0
        %625 = vmatpush1.msra.mxu0 0.0
        %626 = vmatprep.subr.mxu0 0.0
        %627 = vmatpush1.msra.mxu0 0.0
        %628 = vmatprep.subr.mxu0 0.0
        %629 = vmatpush1.msra.mxu0 0.0
        %630 = vmatprep.subr.mxu0 0.0
        %631 = vmatpush1.msra.mxu0 0.0
        %632 = vmatprep.subr.mxu0 0.0
        %633 = vmatpush1.msra.mxu0 0.0
        %634 = vmatprep.subr.mxu0 0.0
        %635 = vmatpush1.msra.mxu0 0.0
        %636 = vmatprep.subr.mxu0 0.0
        %637 = vmatpush1.msra.mxu0 0.0
        %638 = vmatprep.subr.mxu0 0.0
        %639 = vmatpush1.msra.mxu0 0.0
        %640 = vmatprep.subr.mxu0 0.0
        %641 = vmatpush1.msra.mxu0 0.0
        %642 = vmatprep.subr.mxu0 0.0
        %643 = vmatpush1.msra.mxu0 0.0
        %644 = vmatprep.subr.mxu0 0.0
        %645 = vmatpush1.msra.mxu0 0.0
        %646 = vmatprep.subr.mxu0 0.0
        %647 = vmatpush1.msra.mxu0 0.0
        %648 = vmatprep.subr.mxu0 0.0
        %649 = vmatpush1.msra.mxu0 0.0
        %650 = vmatprep.subr.mxu0 0.0
        %651 = vmatpush1.msra.mxu0 0.0
        %652 = vmatprep.subr.mxu0 0.0
        %653 = vmatpush1.msra.mxu0 0.0
        %654 = vmatprep.subr.mxu0 0.0
        %655 = vmatpush1.msra.mxu0 0.0
        %656 = vmatprep.subr.mxu0 0.0
        %657 = vmatpush1.msra.mxu0 0.0
        %658 = vmatprep.subr.mxu0 0.0
        %659 = vmatpush1.msra.mxu0 0.0
        %660 = vmatprep.subr.mxu0 0.0
        %661 = vmatpush1.msra.mxu0 0.0
        %662 = vmatprep.subr.mxu0 0.0
        %663 = vmatpush1.msra.mxu0 0.0
        %664 = vmatprep.subr.mxu0 0.0
        %665 = vmatpush1.msra.mxu0 0.0
        %666 = vmatprep.subr.mxu0 0.0
        %667 = vmatpush1.msra.mxu0 0.0
        %668 = vmatprep.subr.mxu0 0.0
        %669 = vmatpush1.msra.mxu0 0.0
        %670 = vmatprep.subr.mxu0 0.0
        %671 = vmatpush1.msra.mxu0 0.0
        %672 = vmatprep.subr.mxu0 0.0
        %673 = vmatpush1.msra.mxu0 0.0
        %674 = vmatprep.subr.mxu0 0.0
        %675 = vmatpush1.msra.mxu0 0.0
        %676 = vmatprep.subr.mxu0 0.0
        %677 = vmatpush1.msra.mxu0 0.0
        %678 = vmatprep.subr.mxu0 0.0
        %679 = vmatpush1.msra.mxu0 0.0
        %680 = vmatprep.subr.mxu0 0.0
        %681 = vmatpush1.msra.mxu0 0.0
        %682 = vmatprep.mubr.f32.mxu0 0.0
        %683 = vmatmul.mubr.f32.gmra.mrb[0].mxu0 %v612
        %v684 = vpop.f32.mrb[0].mxu0
        %v685 = vadd.f32 0.0, %v684
        %v686 = vpop.f32.mrb[0].mxu0
        %687 = vdwg.mxu0
        %vm688 = vcmask 523264
        %689 = vst.msk [vmem:[%s231] sm:$0xff] %vm688, %v685
        %s690 = sand.u32 %s151, 1
        %s691 = scalar_lea.sflag [#allocation3], %s690
        %s692 = sand.u32 %s151, 1
        %s693 = smul.addr %s692, 8
        %s694 = scalar_lea.vmem [#allocation2], %s693
        // Predicated region
        $region41: #{tpu_custom_call.1} parent=39 // pred_check
          %p695 = pneg %p161
        $region42: #{tpu_custom_call.1} parent=39 // pred_check_branch
          %697 = sbr.rel (%p695) target = $region44
        $region43: #{tpu_custom_call.1} parent=39 // pred_region
          %s699 = ssub.s32 128, 128
          %700 = vsyncadd %s691, %s699
          %s701 = sadd.s32 %s24, %s23
          %s702 = smul.addr %s701, 128
          %s703 = scalar_lea.hbm %s5, %s702
          %s705 = sshll.u32 %s694, 4
          %s706 = int_to_ptr.vmem [resolvable:$true] %s705
          %708 = dma.vmem_to_hbm [thread:$0]  %s706, 128, %s703, %s691
        $region44: #{tpu_custom_call.1} parent=39 // pred_fallthru
          _
      $region40: #{tpu_custom_call.1} parent=5 // pred_fallthru
        _
      %p709 = scmp.le.s32.totalorder 2, %s14
      // Predicated region
      $region45: #{tpu_custom_call.1} parent=5 // pred_check
        %p710 = pneg %p709
      $region46: #{tpu_custom_call.1} parent=5 // pred_check_branch
        %712 = sbr.rel (%p710) target = $region48
      $region47: #{tpu_custom_call.1} parent=5 // pred_region
        %s713 = ssub.s32 %s14, 2
        // Predicated region
        $region49: #{tpu_custom_call.1} parent=47 // pred_check
          %p714 = pneg %p167
        $region50: #{tpu_custom_call.1} parent=47 // pred_check_branch
          %716 = sbr.rel (%p714) target = $region52
        $region51: #{tpu_custom_call.1} parent=47 // pred_region
          %s717 = sand.u32 %s152, 1
          %s718 = scalar_lea.sflag [#allocation3], %s717
          %s719 = sand.u32 %s152, 1
          %s720 = smul.addr %s719, 8
          %s721 = scalar_lea.vmem [#allocation2], %s720
          %722 = dma.done %s718, 128
        $region52: #{tpu_custom_call.1} parent=47 // pred_fallthru
          _
      $region48: #{tpu_custom_call.1} parent=5 // pred_fallthru
        _
    $region6: #{tpu_custom_call.1} parent=1 // loop_footer
      %s18 = sadd.s32 1, %s14
    $region7: #{tpu_custom_call.1} parent=1 // loop_footer_branch
      %13 = sbr.rel target = $region3
    $region8: #{tpu_custom_call.1} parent=1 // loop_exit
      _
    %723 = vsyncpa [#allocation3], 1
    %s724 = scalar_lea.sflag [#allocation3], 1
    %725 = vsyncpa %s724, 1

</llo_original>
